<compile_context>
chip_gen: v7x
topology: tpu7x:2x2x1
jax: 0.10.0
libtpu: 0.0.40
codegen_flags: <defaults>
</compile_context>

<pallas_src>
import jax
import jax.numpy as jnp
from jax import lax
from jax.experimental import pallas as pl
from jax.experimental.pallas import tpu as pltpu


def _cdiv(a: int, b: int) -> int:
    return (a + b - 1) // b


def _round_up(v: int, m: int) -> int:
    return ((v + m - 1) // m) * m


def _default_num_splits() -> int:
    """2 on v7x (two TensorCores per chip share the stats reduction), else 1."""
    try:
        kind = jax.devices()[0].device_kind.lower()
    except Exception:
        return 1
    return 2 if "v7" in kind else 1


# ---------------------------------------------------------------------------
# Pass 1: mean-of-per-location-std (stats) kernels
# ---------------------------------------------------------------------------

def _make_stats3d_kernel(alpha, batch, n128, tile_t, inner, masked):
    """Main path: (B, T, 128) tiles of the (B, N//128, 128) view."""
    inv_b = 1.0 / float(batch)

    def kernel(x_ref, o_ref):
        j = pl.program_id(1)

        @pl.when(j == 0)
        def _init():
            o_ref[...] = jnp.zeros_like(o_ref)

        # Native-dtype loads; casts run on the VPU and are free in this
        # DMA-bound kernel.  Batch reduce = B-1 dense (T,128) slab adds.
        mean = x_ref[0].astype(jnp.float32)                     # (T, 128)
        for i in range(1, batch):
            mean = mean + x_ref[i].astype(jnp.float32)
        mean = mean * inv_b

        d0 = x_ref[0].astype(jnp.float32) - mean                # two-pass var
        var = d0 * d0
        for i in range(1, batch):
            di = x_ref[i].astype(jnp.float32) - mean
            var = var + di * di
        var = var * inv_b

        std = jnp.sqrt(var + alpha)                             # (T, 128)

        if masked:  # only compiled in when a ragged / out-of-range tile exists
            g = pl.program_id(0) * inner + j                    # global tile idx
            row = g * tile_t + lax.broadcasted_iota(jnp.int32, std.shape, 0)
            std = jnp.where(row < n128, std, 0.0)

        # Per-lane partial sums; cross-lane sum + 1/N happen in the wrapper.
        o_ref[...] += jnp.sum(std, axis=0, keepdims=True)       # (1, 128)

    return kernel


def _make_stats2d_kernel(alpha, batch, n_valid, tile_n):
    """Fallback for N % 128 != 0: (B, TILE_N) lane-masked tiles, scalar out."""
    inv_b = 1.0 / float(batch)
    inv_n = 1.0 / float(n_valid)

    def kernel(x_ref, o_ref):
        j = pl.program_id(0)

        @pl.when(j == 0)
        def _init():
            o_ref[...] = jnp.zeros_like(o_ref)

        x = x_ref[...].astype(jnp.float32)                      # (B, TILE_N)
        mean = jnp.sum(x, axis=0, keepdims=True) * inv_b
        d = x - mean
        var = jnp.sum(d * d, axis=0, keepdims=True) * inv_b     # (1, TILE_N)
        std = jnp.sqrt(var + alpha)
        col = j * tile_n + lax.broadcasted_iota(jnp.int32, std.shape, 1)
        std = jnp.where(col < n_valid, std, 0.0)
        o_ref[...] += jnp.sum(std, keepdims=True)

        @pl.when(j == pl.num_programs(0) - 1)
        def _finalize():
            o_ref[...] = o_ref[...] * inv_n

    return kernel


# ---------------------------------------------------------------------------
# Pass 2: fused channel copy + std-channel writeback
# ---------------------------------------------------------------------------

def _make_writeback_kernel(num_copy_steps):
    def kernel(scalar_ref, x_ref, o_ref):
        # Grid axis = output channel-group index.  Steps [0, num_copy_steps)
        # copy G channels of x; the final step broadcasts the std scalar
        # (read from SMEM) into the extra channel.
        j = pl.program_id(0)

        @pl.when(j < num_copy_steps)
        def _copy():
            o_ref[...] = x_ref[...]

        @pl.when(j == num_copy_steps)
        def _std():
            val = scalar_ref[0, 0].astype(o_ref.dtype)
            o_ref[...] = jnp.full(o_ref.shape, val, dtype=o_ref.dtype)

    return kernel


# ---------------------------------------------------------------------------
# Wrapper
# ---------------------------------------------------------------------------

def minibatch_std_dev(x, alpha=1e-8, *, tile_n=None, num_splits=None,
                      stats_tile_budget=4 << 20, copy_block_budget=2 << 20):
    """Pallas implementation of MinibatchStdDev.forward.

    x: (B, C, H, W) -> (B, C+1, H, W).
    """
    b, c, h, w = x.shape
    hw = h * w
    n = c * hw
    itemsize = jnp.dtype(x.dtype).itemsize
    inv_n = 1.0 / float(n)

    if num_splits is None:
        num_splits = _default_num_splits()

    # ---- Pass 1: mean of per-location batch std --------------------------
    if n % 128 == 0:
        n128 = n // 128
        align = max(8, 32 // itemsize)          # sublane tiling: f32/bf16/i8
        if tile_n is not None:
            tile_t = max(1, int(tile_n) // 128)
        else:
            tile_t = max(align, stats_tile_budget // (b * itemsize * 128))
        if tile_t >= n128:
            tile_t = n128                        # full dim: always a legal block
        else:
            tile_t = min(max(align, (tile_t // align) * align), n128)
        grid_n = _cdiv(n128, tile_t)
        splits = max(1, min(int(num_splits), grid_n))
        inner = _cdiv(grid_n, splits)
        masked = (n128 % tile_t != 0) or (grid_n % splits != 0)

        x3 = x.reshape(b, n128, 128)
        partial = pl.pallas_call(
            _make_stats3d_kernel(alpha, b, n128, tile_t, inner, masked),
            out_shape=jax.ShapeDtypeStruct((1, splits * 128), jnp.float32),
            grid_spec=pltpu.PrefetchScalarGridSpec(
                num_scalar_prefetch=0,
                grid=(splits, inner),
                in_specs=[pl.BlockSpec((b, tile_t, 128),
                                       lambda s, j: (0, s * inner + j, 0))],
                out_specs=pl.BlockSpec((1, 128), lambda s, j: (0, s)),
            ),
            compiler_params=pltpu.CompilerParams(
                dimension_semantics=("parallel", "arbitrary"),
                vmem_limit_bytes=32 * 1024 * 1024,
            ),
            cost_estimate=pl.CostEstimate(
                flops=int(7 * b * n),
                transcendentals=int(n),
                bytes_accessed=int(itemsize * b * n + 4 * splits * 128),
            ),
        )(x3)
        mean_std = jnp.sum(partial) * inv_n      # finalize in the wrapper
    else:
        # Fallback: lane-masked (B, TILE_N) tiles with a scalar accumulator.
        want = tile_n if tile_n is not None else stats_tile_budget // max(1, b * itemsize)
        tile_cols = max(128, min(_round_up(int(want), 128), _round_up(n, 128)))
        grid_n = _cdiv(n, tile_cols)
        res = pl.pallas_call(
            _make_stats2d_kernel(alpha, b, n, tile_cols),
            out_shape=jax.ShapeDtypeStruct((1, 1), jnp.float32),
            grid_spec=pltpu.PrefetchScalarGridSpec(
                num_scalar_prefetch=0,
                grid=(grid_n,),
                in_specs=[pl.BlockSpec((b, tile_cols), lambda j: (0, j))],
                out_specs=pl.BlockSpec((1, 1), lambda j: (0, 0)),
            ),
            compiler_params=pltpu.CompilerParams(
                dimension_semantics=("arbitrary",),
                vmem_limit_bytes=32 * 1024 * 1024,
            ),
            cost_estimate=pl.CostEstimate(
                flops=int(7 * b * n),
                transcendentals=int(n),
                bytes_accessed=int(itemsize * b * n + 4),
            ),
        )(x.reshape(b, n))
        mean_std = res[0, 0]

    # ---- Pass 2: fused copy + std-channel writeback ----------------------
    if hw % 128 == 0 and c >= 1:
        scalar2d = mean_std.astype(jnp.float32).reshape(1, 1)   # lives in SMEM
        x2d = x.reshape(b, n)

        # Copy G channels per step (G divides C) with blocks of ~copy_block_budget.
        per_channel = b * hw * itemsize
        g_max = max(1, copy_block_budget // per_channel)
        g = 1
        for div in range(1, c + 1):
            if c % div == 0 and div <= g_max:
                g = div
        num_copy = c // g
        block_cols = g * hw
        block_bytes = b * block_cols * itemsize
        # Explicit scoped-VMEM cap: enough for double-buffered in+out blocks
        # (v5e default is only 16 MiB) but below v7x's 64 MiB physical VMEM.
        vmem2 = int(min(max(32 << 20, 4 * block_bytes + (2 << 20)), 48 << 20))
        # TODO(synk): tile hw with a second grid axis when a single channel
        # block (b*hw*itemsize) alone exceeds the VMEM budget.

        out2d = pl.pallas_call(
            _make_writeback_kernel(num_copy),
            out_shape=jax.ShapeDtypeStruct((b, (c + 1) * hw), x.dtype),
            grid_spec=pltpu.PrefetchScalarGridSpec(
                num_scalar_prefetch=0,
                grid=(num_copy + 1,),
                in_specs=[
                    pl.BlockSpec(memory_space=pltpu.MemorySpace.SMEM),
                    pl.BlockSpec((b, block_cols),
                                 lambda j: (0, jnp.minimum(j, num_copy - 1))),
                ],
                out_specs=pl.BlockSpec((b, block_cols), lambda j: (0, j)),
            ),
            compiler_params=pltpu.CompilerParams(
                dimension_semantics=("parallel",),
                vmem_limit_bytes=vmem2,
            ),
            cost_estimate=pl.CostEstimate(
                flops=0,
                transcendentals=0,
                bytes_accessed=int(itemsize * b * n + itemsize * b * (c + 1) * hw),
            ),
        )(scalar2d, x2d)
        return out2d.reshape(b, c + 1, h, w)

    # Non-lane-dense spatial size: broadcast + concat in the wrapper.
    std_map = jnp.broadcast_to(mean_std.astype(x.dtype).reshape(1, 1, 1, 1),
                               (b, 1, h, w))
    return jnp.concatenate([x, std_map], axis=1)


# ---------------------------------------------------------------------------
# Reference + tests
# ---------------------------------------------------------------------------

def _reference(x, alpha=1e-8):
    y = x - x.mean(axis=0, keepdims=True)
    y = jnp.sqrt(jnp.mean(y ** 2, axis=0) + alpha)
    y = jnp.mean(y).reshape(1, 1, 1, 1)
    y = jnp.broadcast_to(y, (x.shape[0], 1, x.shape[2], x.shape[3]))
    return jnp.concatenate([x, y], axis=1)


if __name__ == "__main__":
    key = jax.random.PRNGKey(0)
    k1, k2, k3 = jax.random.split(key, 3)

    # 1) Canonical small shape: single stats tile, single copy step.
    x1 = jax.random.normal(k1, (2, 4, 16, 16), dtype=jnp.float32)
    out1 = jax.block_until_ready(minibatch_std_dev(x1))
    ref1 = _reference(x1)
    assert out1.shape == (2, 5, 16, 16), out1.shape
    assert jnp.allclose(out1, ref1, atol=1e-5, rtol=1e-5), "mismatch (test 1)"

    # 2) Multi-tile stats grid (exercises init/accumulate across tiles).
    x2 = jax.random.normal(k2, (2, 8, 32, 32), dtype=jnp.float32)
    out2 = jax.block_until_ready(minibatch_std_dev(x2, tile_n=2048))
    assert jnp.allclose(out2, _reference(x2), atol=1e-5, rtol=1e-5), "mismatch (test 2)"

    # 3) Ragged last tile (exercises the masked stats variant).
    x3 = jax.random.normal(k3, (2, 5, 32, 32), dtype=jnp.float32)
    out3 = jax.block_until_ready(minibatch_std_dev(x3, tile_n=2048))
    assert jnp.allclose(out3, _reference(x3), atol=1e-5, rtol=1e-5), "mismatch (test 3)"

    # 4) Native-dtype streaming: bf16 in / bf16 out, stats computed in f32.
    x1_bf = x1.astype(jnp.bfloat16)
    out_bf = jax.block_until_ready(minibatch_std_dev(x1_bf))
    assert out_bf.dtype == jnp.bfloat16 and out_bf.shape == (2, 5, 16, 16)
    assert jnp.array_equal(out_bf[:, :4], x1_bf), "x channels not copied (bf16)"
    std_bf = out_bf[0, 4, 0, 0].astype(jnp.float32)
    std_ref = ref1[0, 4, 0, 0].astype(jnp.float32)
    assert jnp.abs(std_bf - std_ref) < 5e-2, "std channel off (bf16)"

    print("KERNEL_OK")
</pallas_src>

<mosaic_0001>
module attributes {stable_mosaic.version = 11 : i64} {
  func.func @kernel(%arg0: i32, %arg1: i32, %arg2: memref<2x8x128xf32, #tpu.memory_space<vmem>>, %arg3: memref<1x128xf32, #tpu.memory_space<vmem>>) attributes {dimension_semantics = [#tpu.dimension_semantics<parallel>, #tpu.dimension_semantics<arbitrary>], iteration_bounds = array<i64: 1, 1>, scalar_prefetch = 0 : i64, scratch_operands = 0 : i64, tpu.core_type = #tpu.core_type<tc>, window_params = [{transform_indices = @transform_0, window_bounds = array<i64: 2, 8, 128>}, {transform_indices = @transform_1, window_bounds = array<i64: 1, 128>}]} {
    %c0_i32 = arith.constant 0 : i32
    %0 = arith.cmpi eq, %arg1, %c0_i32 : i32
    %1 = arith.extui %0 : i1 to i32
    %c0_i32_0 = arith.constant 0 : i32
    %2 = arith.cmpi ne, %1, %c0_i32_0 : i32
    scf.if %2 {
      %cst_18 = arith.constant 0.000000e+00 : f32
      %29 = vector.broadcast %cst_18 : f32 to vector<1x128xf32>
      %c0_19 = arith.constant 0 : index
      %c0_20 = arith.constant 0 : index
      %30 = vector.load %arg3[%c0_19, %c0_20] : memref<1x128xf32, #tpu.memory_space<vmem>>, vector<1x128xf32>
      tpu.vector_store %arg3[%c0_19, %c0_20], %29 {strides = array<i32>} : memref<1x128xf32, #tpu.memory_space<vmem>>, vector<1x128xf32>,
    } else {
    }
    %c0 = arith.constant 0 : index
    %c0_1 = arith.constant 0 : index
    %c0_2 = arith.constant 0 : index
    %3 = vector.load %arg2[%c0, %c0_1, %c0_2] : memref<2x8x128xf32, #tpu.memory_space<vmem>>, vector<1x8x128xf32>
    %4 = vector.shape_cast %3 : vector<1x8x128xf32> to vector<8x128xf32>
    %c1 = arith.constant 1 : index
    %c0_3 = arith.constant 0 : index
    %c0_4 = arith.constant 0 : index
    %5 = vector.load %arg2[%c1, %c0_3, %c0_4] : memref<2x8x128xf32, #tpu.memory_space<vmem>>, vector<1x8x128xf32>
    %6 = vector.shape_cast %5 : vector<1x8x128xf32> to vector<8x128xf32>
    %7 = arith.addf %4, %6 : vector<8x128xf32>
    %cst = arith.constant 5.000000e-01 : f32
    %8 = vector.broadcast %cst : f32 to vector<8x128xf32>
    %9 = arith.mulf %7, %8 : vector<8x128xf32>
    %c0_5 = arith.constant 0 : index
    %c0_6 = arith.constant 0 : index
    %c0_7 = arith.constant 0 : index
    %10 = vector.load %arg2[%c0_5, %c0_6, %c0_7] : memref<2x8x128xf32, #tpu.memory_space<vmem>>, vector<1x8x128xf32>
    %11 = vector.shape_cast %10 : vector<1x8x128xf32> to vector<8x128xf32>
    %12 = arith.subf %11, %9 : vector<8x128xf32>
    %13 = arith.mulf %12, %12 : vector<8x128xf32>
    %c1_8 = arith.constant 1 : index
    %c0_9 = arith.constant 0 : index
    %c0_10 = arith.constant 0 : index
    %14 = vector.load %arg2[%c1_8, %c0_9, %c0_10] : memref<2x8x128xf32, #tpu.memory_space<vmem>>, vector<1x8x128xf32>
    %15 = vector.shape_cast %14 : vector<1x8x128xf32> to vector<8x128xf32>
    %16 = arith.subf %15, %9 : vector<8x128xf32>
    %17 = arith.mulf %16, %16 : vector<8x128xf32>
    %18 = arith.addf %13, %17 : vector<8x128xf32>
    %cst_11 = arith.constant 5.000000e-01 : f32
    %19 = vector.broadcast %cst_11 : f32 to vector<8x128xf32>
    %20 = arith.mulf %18, %19 : vector<8x128xf32>
    %cst_12 = arith.constant 9.99999993E-9 : f32
    %21 = vector.broadcast %cst_12 : f32 to vector<8x128xf32>
    %22 = arith.addf %20, %21 : vector<8x128xf32>
    %23 = math.sqrt %22 : vector<8x128xf32>
    %c0_13 = arith.constant 0 : index
    %c0_14 = arith.constant 0 : index
    %24 = vector.load %arg3[%c0_13, %c0_14] : memref<1x128xf32, #tpu.memory_space<vmem>>, vector<1x128xf32>
    %cst_15 = arith.constant dense<0.000000e+00> : vector<128xf32>
    %25 = vector.multi_reduction <add>, %23, %cst_15 [0] : vector<8x128xf32> to vector<128xf32>
    %26 = vector.shape_cast %25 : vector<128xf32> to vector<1x128xf32>
    %27 = arith.addf %24, %26 : vector<1x128xf32>
    %c0_16 = arith.constant 0 : index
    %c0_17 = arith.constant 0 : index
    %28 = vector.load %arg3[%c0_16, %c0_17] : memref<1x128xf32, #tpu.memory_space<vmem>>, vector<1x128xf32>
    tpu.vector_store %arg3[%c0_16, %c0_17], %27 {strides = array<i32>} : memref<1x128xf32, #tpu.memory_space<vmem>>, vector<1x128xf32>,
    return
  }
  func.func @transform_0(%arg0: i32, %arg1: i32) -> (i32, i32, i32) {
    %c1_i32 = arith.constant 1 : i32
    %0 = arith.muli %arg0, %c1_i32 : i32
    %1 = arith.addi %0, %arg1 : i32
    %c0_i32 = arith.constant 0 : i32
    %c0_i32_0 = arith.constant 0 : i32
    %c0_i32_1 = arith.constant 0 : i32
    return %c0_i32, %1, %c0_i32_0 : i32, i32, i32
  }
  func.func @transform_1(%arg0: i32, %arg1: i32) -> (i32, i32) {
    %c0_i32 = arith.constant 0 : i32
    %c0_i32_0 = arith.constant 0 : i32
    return %c0_i32, %arg0 : i32, i32
  }
}

</mosaic_0001>

<llo_original>
// kernel: tpu_custom_call.1
$region0: #{tpu_custom_call.1}
  #allocation0 [shape = 'u32[]', space=smem, size = 0x4, offset = 0x4, fixed_abs, tag = 'smem constant byte address 0x4 - core index']
  #allocation1 [shape = 'u32[144,128]{1,0:T(1,128)}', space=vmem, size = 0x12000, scoped, tag = 'internal scratch']
  %s0 = inlined_call_operand.hbm [shape: f32[2,8,128], index: 0, kind: input, shape index: {}]
  %s1 = inlined_call_operand.hbm [shape: f32[1,128], index: 1, kind: output, shape index: {}]
  %s2 = sld [smem:[#allocation0]]
  $region22: #{tpu_custom_call.1} parent=0
    _
  %s4 = ssub.s32 1, %s2
  %s5 = scalar_select 0, %s4, %s2
  $region1: #{tpu_custom_call.1} parent=0
    #allocation2 [shape = 'u8[8192]{0}', space=vmem, size = 0x2000, scoped, tag = 'input window, operand 0, single buffered']
    #allocation3 [shape = 's32[1]{0}', space=sflag, size = 0x4, scoped, tag = 'scoped memory for tpu_custom_call.1']
    #allocation4 [shape = 's32[1]{0}', space=sflag, size = 0x4, scoped, tag = 'scoped memory for tpu_custom_call.1']
    #allocation5 [shape = 'u8[512]{0}', space=vmem, size = 0x400, scoped, tag = 'output window, operand 0, single buffered']
    %6 = vsyncpa [#allocation3], 0
    %7 = vsyncpa [#allocation4], 0
    // Predicated region
    $region2: #{tpu_custom_call.1} parent=1 // pred_check
      _
    $region3: #{tpu_custom_call.1} parent=1 // pred_check_branch
      %9 = sbr.rel (0) target = $region5
    $region4: #{tpu_custom_call.1} parent=1 // pred_region
      %s10 = sadd.s32 0, 0
      %s12 = ssub.s32 256, 256
      %13 = vsyncadd [#allocation3], %s12
      %s14 = smul.addr %s10, 128
      %s15 = scalar_lea.hbm %s0, %s14
      %s16 = sshll.u32 [#allocation2], 4
      %s17 = int_to_ptr.vmem [resolvable:$true] %s16
      %22 = dma.hbm_to_vmem [thread:$0]  %s15, 256, %s17, [#allocation3], 128, 128, 8
    $region5: #{tpu_custom_call.1} parent=1 // pred_fallthru
      _
    // Predicated region
    $region6: #{tpu_custom_call.1} parent=1 // pred_check
      _
    $region7: #{tpu_custom_call.1} parent=1 // pred_check_branch
      %24 = sbr.rel (0) target = $region9
    $region8: #{tpu_custom_call.1} parent=1 // pred_region
      %25 = dma.done [#allocation3], 256
    $region9: #{tpu_custom_call.1} parent=1 // pred_fallthru
      _
    %s26 = sadd.s32 0, 0
    %p27 = scmp.eq.s32.totalorder 0, 0
    // Predicated region
    $region10: #{tpu_custom_call.1} parent=1 // pred_check
      %p28 = pneg %p27
    $region11: #{tpu_custom_call.1} parent=1 // pred_check_branch
      %30 = sbr.rel (%p28) target = $region13
    $region12: #{tpu_custom_call.1} parent=1 // pred_region
      %31 = vst [vmem:[#allocation5] sm:$0x1] 0.0
    $region13: #{tpu_custom_call.1} parent=1 // pred_fallthru
      _
    %v32 = vld [vmem:[#allocation2] sm:$0xff]
    %s33 = scalar_lea.vmem [#allocation2], 8
    %v34 = vld [vmem:[%s33] sm:$0xff]
    %v35 = vadd.f32 %v32, %v34
    %v36 = vmul.f32 %v35, 0.5
    %v37 = vsub.f32 %v32, %v36
    %v38 = vmul.f32 %v37, %v37
    %v39 = vsub.f32 %v34, %v36
    %v40 = vmul.f32 %v39, %v39
    %v41 = vadd.f32 %v38, %v40
    %v42 = vmul.f32 %v41, 0.5
    %v43 = vadd.f32 %v42, 1e-08
    %v44 = vrsqrt.pop %v43
    %v45 = vmul.f32 %v43, %v44
    %vm46 = vcmp.eq.f32.partialorder %v43, inf
    %v47 = vsel %vm46, %v43, %v45
    %vm48 = vcmp.eq.f32.partialorder %v43, 0.0
    %v49 = vand.u32 %v43, 2147483648
    %v50 = vsel %vm48, %v49, %v47
    %v51 = vld [vmem:[#allocation5] sm:$0x1]
    %v52 = vrot.slane %v50, 4
    %v53 = vadd.f32 %v50, %v52
    %v54 = vrot.slane %v53, 2
    %v55 = vadd.f32 %v53, %v54
    %v56 = vrot.slane %v55, 1
    %v57 = vadd.f32 %v55, %v56
    %v58 = vadd.f32 %v51, %v57
    %59 = vst [vmem:[#allocation5] sm:$0x1] %v58
    // Predicated region
    $region14: #{tpu_custom_call.1} parent=1 // pred_check
      _
    $region15: #{tpu_custom_call.1} parent=1 // pred_check_branch
      %61 = sbr.rel (0) target = $region17
    $region16: #{tpu_custom_call.1} parent=1 // pred_region
      %s63 = ssub.s32 16, 16
      %64 = vsyncadd [#allocation4], %s63
      %s66 = sshll.u32 [#allocation5], 4
      %s67 = int_to_ptr.vmem [resolvable:$true] %s66
      %69 = dma.vmem_to_hbm [thread:$0]  %s67, 16, %s1, [#allocation4]
    $region17: #{tpu_custom_call.1} parent=1 // pred_fallthru
      _
    // Predicated region
    $region18: #{tpu_custom_call.1} parent=1 // pred_check
      _
    $region19: #{tpu_custom_call.1} parent=1 // pred_check_branch
      %71 = sbr.rel (0) target = $region21
    $region20: #{tpu_custom_call.1} parent=1 // pred_region
      %72 = dma.done [#allocation4], 16
    $region21: #{tpu_custom_call.1} parent=1 // pred_fallthru
      _
    %73 = vsyncpa [#allocation3], 1
    %74 = vsyncpa [#allocation4], 1

</llo_original>
